<compile_context>
chip_gen: v6e
topology: v6e:2x2x1
jax: 0.10.0
libtpu: 0.0.40
codegen_flags: <defaults>
</compile_context>

<pallas_src>
import functools

import jax
import jax.numpy as jnp
from jax.experimental import pallas as pl
from jax.experimental.pallas import tpu as pltpu


def _ada_rms_norm_kernel(x_ref, scale_ref, o_ref, *, eps):
    """One (BB, TS, F) tile of AdaRMSNorm.

    x_ref:     (BB, TS, F)  input tile, original dtype
    scale_ref: (BB, 1, F)   f32 per-batch scale rows (cond @ W^T + 1)
    o_ref:     (BB, TS, F)  output tile

    NOTE: normalization is strictly row-local (mean over the last axis only),
    so padded remainder rows (S % TS != 0 or B % BB != 0) are harmless: their
    outputs are masked on writeback and never feed other rows' statistics.
    Do not add cross-row statistics without revisiting this.
    """
    x = x_ref[...]
    x32 = x.astype(jnp.float32)
    mean_sq = jnp.mean(x32 * x32, axis=-1, keepdims=True)       # (BB, TS, 1) f32
    inv = jax.lax.rsqrt(mean_sq + eps)                          # (BB, TS, 1) f32
    # Reference rounding: out = x * (scale_f32 * rsqrt(...)).astype(x.dtype)
    full_scale = (scale_ref[...] * inv).astype(x.dtype)         # (BB, TS, F)
    o_ref[...] = (x * full_scale).astype(o_ref.dtype)


def _sublane_rows(itemsize):
    # Dtype-native sublane packing: f32 -> 8 rows / vreg, bf16/f16 -> 16, int8/fp8 -> 32.
    return {4: 8, 2: 16, 1: 32}.get(itemsize, 8)


def _vmem_capacity_bytes():
    """Generation-aware physical VMEM per TensorCore (64 MiB on v7x, 128 MiB v5e/v6e)."""
    try:
        cap = getattr(pltpu.get_tpu_info(), "vmem_capacity_bytes", None)
        if cap:
            return int(cap)
    except Exception:
        pass
    return 64 * 1024 * 1024  # conservative fallback: v7x per-TensorCore VMEM


def _choose_tiles(B, S, F, itemsize, vmem_limit_bytes):
    """Pick (batch_tile BB, seq_tile TS) for the (BB, TS, F) x/out blocks.

    Byte-based sizing (kernel is HBM-BW bound): aim for ~2 MiB of x per tile,
    while keeping 2x-in + 2x-out pipeline buffers PLUS ~3 f32-sized in-kernel
    temporaries (x32, scale*inv, x*scale) under the scoped VMEM limit.
    """
    sub = _sublane_rows(itemsize)
    per_row_bytes = F * (4 * itemsize + 3 * 4)       # pipeline bufs + f32 temps
    budget = (vmem_limit_bytes * 3) // 4             # headroom for sems/compiler scratch
    max_rows = max(budget // max(per_row_bytes, 1), sub)
    target_rows = max((2 * 1024 * 1024) // max(F * itemsize, 1), sub)
    rows = min(max_rows, target_rows)

    if S <= rows:
        # Whole sequence fits: fuse batches per tile (short-seq / large-batch
        # regime) so DMAs stay large and grid steps are few.
        ts = S
        bb = max(1, min(B, rows // max(S, 1)))
        while bb > 1 and B % bb != 0:                # avoid a padded remainder batch tile
            bb -= 1
    else:
        bb = 1
        ts = min(S, max(sub, (rows // sub) * sub))
        if S % ts != 0:                              # prefer a divisor of S
            for cand in range(ts, sub - 1, -sub):
                if S % cand == 0:
                    ts = cand
                    break

    # Keep both TensorCores busy on v7x: avoid a single-step grid when splittable.
    if pl.cdiv(B, bb) * pl.cdiv(S, ts) == 1:
        if bb > 1:
            bb = (B + 1) // 2
        elif S >= 2 * sub:
            ts = (((S + 1) // 2 + sub - 1) // sub) * sub
    return bb, ts


def ada_rms_norm(x, cond, weight, eps=1e-6, batch_tile=None, seq_tile=None):
    """x: [B, S, F], cond: [B, C], weight: [F, C] (PyTorch nn.Linear layout)."""
    B, S, F = x.shape

    # Hoisted conditioning: scale = cond @ W^T + 1, f32, shaped [B, 1, F].
    # An M=1 matmul is useless on the MXU inside the kernel; XLA handles it and
    # the kernel stays a pure vld/compute/vst stream.
    scale = (
        jnp.dot(
            cond.astype(jnp.float32),
            weight.astype(jnp.float32).T,
            preferred_element_type=jnp.float32,
        )
        + 1.0
    )[:, None, :]

    # Scoped VMEM limit: comfortably below physical per-TC VMEM on every gen.
    vmem_limit = min((_vmem_capacity_bytes() * 3) // 4, 96 * 1024 * 1024)

    auto_bb, auto_ts = _choose_tiles(B, S, F, x.dtype.itemsize, vmem_limit)
    if batch_tile is not None:
        bb = batch_tile
    elif seq_tile is not None:
        bb = 1
    else:
        bb = auto_bb
    if seq_tile is not None:
        ts = seq_tile
    elif batch_tile is not None:
        ts = S
    else:
        ts = auto_ts

    grid = (pl.cdiv(B, bb), pl.cdiv(S, ts))
    kernel = functools.partial(_ada_rms_norm_kernel, eps=eps)

    return pl.pallas_call(
        kernel,
        out_shape=jax.ShapeDtypeStruct((B, S, F), x.dtype),
        grid_spec=pltpu.PrefetchScalarGridSpec(
            num_scalar_prefetch=0,
            grid=grid,
            in_specs=[
                pl.BlockSpec((bb, ts, F), lambda b, s: (b, s, 0)),   # x tile
                pl.BlockSpec((bb, 1, F), lambda b, s: (b, 0, 0)),    # scale rows
            ],
            out_specs=pl.BlockSpec((bb, ts, F), lambda b, s: (b, s, 0)),
        ),
        compiler_params=pltpu.CompilerParams(
            dimension_semantics=("parallel", "parallel"),
            vmem_limit_bytes=vmem_limit,
        ),
    )(x, scale)


def ada_rms_norm_ref(x, cond, weight, eps=1e-6):
    """Pure-JAX reference mirroring the PyTorch forward (incl. rounding order)."""
    scale = cond.astype(jnp.float32) @ weight.astype(jnp.float32).T   # [B, F]
    scale = scale[:, None, :] + 1.0                                   # [B, 1, F]
    x32 = x.astype(jnp.float32)
    mean_sq = jnp.mean(x32 * x32, axis=-1, keepdims=True)
    scale = scale * jax.lax.rsqrt(mean_sq + eps)
    return x * scale.astype(x.dtype)


if __name__ == "__main__":
    B, S, F, C = 2, 16, 128, 32
    eps = 1e-6

    key = jax.random.PRNGKey(0)
    kx, kc, kw = jax.random.split(key, 3)
    x = jax.random.normal(kx, (B, S, F), dtype=jnp.float32)
    cond = jax.random.normal(kc, (B, C), dtype=jnp.float32)

    # Module __init__ zero-initializes the linear weight ([features, cond_features]).
    w_zero = jnp.zeros((F, C), dtype=jnp.float32)
    out = jax.block_until_ready(ada_rms_norm(x, cond, w_zero, eps))
    ref = ada_rms_norm_ref(x, cond, w_zero, eps)
    assert jnp.allclose(out, ref, atol=1e-5, rtol=1e-5)

    # Non-zero weights exercise the (hoisted) conditioning path.
    w_rand = 0.02 * jax.random.normal(kw, (F, C), dtype=jnp.float32)
    out2 = jax.block_until_ready(ada_rms_norm(x, cond, w_rand, eps))
    ref2 = ada_rms_norm_ref(x, cond, w_rand, eps)
    assert jnp.allclose(out2, ref2, atol=1e-5, rtol=1e-5)

    # Multi-tile sequence path (BB=1, grid=(B, S//8)).
    out3 = jax.block_until_ready(ada_rms_norm(x, cond, w_rand, eps, seq_tile=8))
    assert jnp.allclose(out3, ref2, atol=1e-5, rtol=1e-5)

    # Fused-batch path (BB=B, whole-S tile) for the short-seq / large-batch regime.
    out4 = jax.block_until_ready(ada_rms_norm(x, cond, w_rand, eps, batch_tile=2))
    assert jnp.allclose(out4, ref2, atol=1e-5, rtol=1e-5)

    # bf16 path: f32 statistics, single cast (matches reference rounding order).
    x_bf16 = x.astype(jnp.bfloat16)
    out5 = jax.block_until_ready(ada_rms_norm(x_bf16, cond, w_rand, eps))
    ref5 = ada_rms_norm_ref(x_bf16, cond, w_rand, eps)
    assert jnp.allclose(
        out5.astype(jnp.float32), ref5.astype(jnp.float32), atol=2e-2, rtol=2e-2
    )

    print("KERNEL_OK")
</pallas_src>

<mosaic_0001>
module attributes {stable_mosaic.version = 11 : i64} {
  func.func @_ada_rms_norm_kernel(%arg0: i32, %arg1: i32, %arg2: memref<1x16x128xf32, #tpu.memory_space<vmem>>, %arg3: memref<1x1x128xf32, #tpu.memory_space<vmem>>, %arg4: memref<1x16x128xf32, #tpu.memory_space<vmem>>) attributes {dimension_semantics = [#tpu.dimension_semantics<parallel>, #tpu.dimension_semantics<parallel>], iteration_bounds = array<i64: 2, 1>, scalar_prefetch = 0 : i64, scratch_operands = 0 : i64, tpu.core_type = #tpu.core_type<tc>, window_params = [{transform_indices = @transform_0, window_bounds = array<i64: 1, 16, 128>}, {transform_indices = @transform_1, window_bounds = array<i64: 1, 1, 128>}, {transform_indices = @transform_2, window_bounds = array<i64: 1, 16, 128>}]} {
    %c0 = arith.constant 0 : index
    %c0_0 = arith.constant 0 : index
    %c0_1 = arith.constant 0 : index
    %0 = vector.load %arg2[%c0, %c0_0, %c0_1] : memref<1x16x128xf32, #tpu.memory_space<vmem>>, vector<1x16x128xf32>
    %1 = arith.mulf %0, %0 : vector<1x16x128xf32>
    %cst = arith.constant dense<0.000000e+00> : vector<1x16xf32>
    %2 = vector.multi_reduction <add>, %1, %cst [2] : vector<1x16x128xf32> to vector<1x16xf32>
    %3 = vector.shape_cast %2 : vector<1x16xf32> to vector<1x16x1xf32>
    %cst_2 = arith.constant 1.280000e+02 : f32
    %4 = vector.broadcast %cst_2 : f32 to vector<1x16x1xf32>
    %5 = arith.divf %3, %4 : vector<1x16x1xf32>
    %cst_3 = arith.constant 9.99999997E-7 : f32
    %6 = vector.broadcast %cst_3 : f32 to vector<1x16x1xf32>
    %7 = arith.addf %5, %6 : vector<1x16x1xf32>
    %8 = math.rsqrt %7 : vector<1x16x1xf32>
    %c0_4 = arith.constant 0 : index
    %c0_5 = arith.constant 0 : index
    %c0_6 = arith.constant 0 : index
    %9 = vector.load %arg3[%c0_4, %c0_5, %c0_6] : memref<1x1x128xf32, #tpu.memory_space<vmem>>, vector<1x1x128xf32>
    %10 = vector.broadcast %9 : vector<1x1x128xf32> to vector<1x16x128xf32>
    %11 = vector.broadcast %8 : vector<1x16x1xf32> to vector<1x16x128xf32>
    %12 = arith.mulf %10, %11 : vector<1x16x128xf32>
    %13 = arith.mulf %0, %12 : vector<1x16x128xf32>
    %c0_7 = arith.constant 0 : index
    %c0_8 = arith.constant 0 : index
    %c0_9 = arith.constant 0 : index
    %14 = vector.load %arg4[%c0_7, %c0_8, %c0_9] : memref<1x16x128xf32, #tpu.memory_space<vmem>>, vector<1x16x128xf32>
    tpu.vector_store %arg4[%c0_7, %c0_8, %c0_9], %13 {strides = array<i32>} : memref<1x16x128xf32, #tpu.memory_space<vmem>>, vector<1x16x128xf32>,
    return
  }
  func.func @transform_0(%arg0: i32, %arg1: i32) -> (i32, i32, i32) {
    %c0_i32 = arith.constant 0 : i32
    %c0_i32_0 = arith.constant 0 : i32
    return %arg0, %arg1, %c0_i32 : i32, i32, i32
  }
  func.func @transform_1(%arg0: i32, %arg1: i32) -> (i32, i32, i32) {
    %c0_i32 = arith.constant 0 : i32
    %c0_i32_0 = arith.constant 0 : i32
    %c0_i32_1 = arith.constant 0 : i32
    return %arg0, %c0_i32, %c0_i32_0 : i32, i32, i32
  }
  func.func @transform_2(%arg0: i32, %arg1: i32) -> (i32, i32, i32) {
    %c0_i32 = arith.constant 0 : i32
    %c0_i32_0 = arith.constant 0 : i32
    return %arg0, %arg1, %c0_i32 : i32, i32, i32
  }
}

</mosaic_0001>

<llo_original>
// kernel: tpu_custom_call.1
$region0: #{tpu_custom_call.1}
  #allocation0 [shape = 'u32[]', space=smem, size = 0x4, offset = 0x4, fixed_abs, tag = 'smem constant byte address 0x4 - core index']
  #allocation1 [shape = 'u32[144,128]{1,0:T(1,128)}', space=vmem, size = 0x12000, scoped, tag = 'internal scratch']
  %s0 = inlined_call_operand.hbm [shape: f32[2,16,128], index: 0, kind: input, shape index: {}]
  %s1 = inlined_call_operand.hbm [shape: f32[2,1,128], index: 1, kind: input, shape index: {}]
  %s2 = inlined_call_operand.hbm [shape: f32[2,16,128], index: 2, kind: output, shape index: {}]
  %s3 = sld [smem:[#allocation0]]
  $region49: #{tpu_custom_call.1} parent=0
    _
  %s5 = ssub.s32 1, %s3
  %s6 = scalar_select 0, %s5, %s3
  $region1: #{tpu_custom_call.1} parent=0
    #allocation2 [shape = 'u8[16384]{0}', space=vmem, size = 0x4000, scoped, tag = 'input window, operand 0']
    #allocation3 [shape = 's32[2]{0}', space=sflag, size = 0x8, scoped, tag = 'scoped memory for tpu_custom_call.1']
    #allocation4 [shape = 's32[2]{0}', space=sflag, size = 0x8, scoped, tag = 'scoped memory for tpu_custom_call.1']
    #allocation5 [shape = 'u8[1024]{0}', space=vmem, size = 0x400, scoped, tag = 'input window, operand 1']
    #allocation6 [shape = 's32[2]{0}', space=sflag, size = 0x8, scoped, tag = 'scoped memory for tpu_custom_call.1']
    #allocation7 [shape = 'u8[16384]{0}', space=vmem, size = 0x4000, scoped, tag = 'output window, operand 0']
    %7 = vsyncpa [#allocation3], 0
    %s8 = scalar_lea.sflag [#allocation3], 1
    %9 = vsyncpa %s8, 0
    %10 = vsyncpa [#allocation6], 0
    %s11 = scalar_lea.sflag [#allocation6], 1
    %12 = vsyncpa %s11, 0
    %13 = vsyncpa [#allocation4], 0
    %s14 = scalar_lea.sflag [#allocation4], 1
    %15 = vsyncpa %s14, 0
    loop: start=0, step=1, limit=4
    $region2: #{tpu_custom_call.1} parent=1 // loop_pre_header
      _
    $region3: #{tpu_custom_call.1} parent=1 // loop_header
      %s17 = sphi 0, %s21
      %p18 = scmp.ge.s32.totalorder %s17, 4
      %s24 = sphi 0, %s36
      %s25 = sphi 0, %s32
      %s26 = sphi 0, %s24
      %s27 = sphi 0, %s25
      %s28 = sphi 0, %s26
      %s29 = sphi 0, %s27
      %s41 = sphi 0, %s43
      %s44 = sphi 0, %s41
      %s45 = sphi 0, %s44
      %s61 = sphi 0, %s45
      %s67 = sphi 0, %s69
      %s70 = sphi 0, %s67
      %s71 = sphi 0, %s70
      %s87 = sphi 0, %s71
      %s95 = sphi 0, %s97
      %s98 = sphi 0, %s95
      %s99 = sphi 0, %s98
      %s115 = sphi 0, %s99
    $region4: #{tpu_custom_call.1} parent=1 // loop_header_branch
      %20 = sbr.rel (%p18) target = $region8
    $region5: #{tpu_custom_call.1} parent=1 // loop_body
      %s22 = ssub.s32 %s17, 1
      %s23 = ssub.s32 %s17, 2
      %s30 = sadd.s32 1, %s25
      %p31 = scmp.ge.s32.totalorder %s30, 1
      %s32 = scalar_select %p31, 0, %s30
      %s33 = sadd.s32 1, %s24
      %s34 = scalar_select %p31, %s33, %s24
      %p35 = scmp.ge.s32.totalorder %s34, 2
      %s36 = scalar_select %p35, 0, %s34
      %s37 = ssub.s32 %s24, %s36
      %s38 = ssub.s32 %s25, %s32
      %s39 = sor.u32 %s37, %s38
      %p40 = scmp.eq.s32.totalorder %s39, 0
      %s42 = sadd.s32 %s41, 1
      %s43 = scalar_select %p40, %s41, %s42
      %p46 = pneg %p40
      %p47 = scmp.eq.s32.totalorder %s17, 1
      %p48 = por %p46, %p47
      %p49 = scmp.ne.s32.totalorder %s41, %s44
      %p50 = scmp.eq.s32.totalorder %s17, 0
      %p51 = por %p49, %p50
      %p52 = scmp.ne.s32.totalorder %s41, %s44
      %p53 = scmp.eq.s32.totalorder %s22, 1
      %p54 = por %p52, %p53
      %p55 = scmp.ne.s32.totalorder %s44, %s45
      %p56 = scmp.eq.s32.totalorder %s22, 0
      %p57 = por %p55, %p56
      %p58 = scmp.ne.s32.totalorder %s44, %s45
      %p59 = scmp.eq.s32.totalorder %s23, 1
      %p60 = por %p58, %p59
      %p62 = scmp.ne.s32.totalorder %s45, %s61
      %p63 = scmp.eq.s32.totalorder %s23, 0
      %p64 = por %p62, %p63
      %s65 = ssub.s32 %s24, %s36
      %p66 = scmp.eq.s32.totalorder %s65, 0
      %s68 = sadd.s32 %s67, 1
      %s69 = scalar_select %p66, %s67, %s68
      %p72 = pneg %p66
      %p73 = scmp.eq.s32.totalorder %s17, 1
      %p74 = por %p72, %p73
      %p75 = scmp.ne.s32.totalorder %s67, %s70
      %p76 = scmp.eq.s32.totalorder %s17, 0
      %p77 = por %p75, %p76
      %p78 = scmp.ne.s32.totalorder %s67, %s70
      %p79 = scmp.eq.s32.totalorder %s22, 1
      %p80 = por %p78, %p79
      %p81 = scmp.ne.s32.totalorder %s70, %s71
      %p82 = scmp.eq.s32.totalorder %s22, 0
      %p83 = por %p81, %p82
      %p84 = scmp.ne.s32.totalorder %s70, %s71
      %p85 = scmp.eq.s32.totalorder %s23, 1
      %p86 = por %p84, %p85
      %p88 = scmp.ne.s32.totalorder %s71, %s87
      %p89 = scmp.eq.s32.totalorder %s23, 0
      %p90 = por %p88, %p89
      %s91 = ssub.s32 %s24, %s36
      %s92 = ssub.s32 %s25, %s32
      %s93 = sor.u32 %s91, %s92
      %p94 = scmp.eq.s32.totalorder %s93, 0
      %s96 = sadd.s32 %s95, 1
      %s97 = scalar_select %p94, %s95, %s96
      %p100 = pneg %p94
      %p101 = scmp.eq.s32.totalorder %s17, 1
      %p102 = por %p100, %p101
      %p103 = scmp.ne.s32.totalorder %s95, %s98
      %p104 = scmp.eq.s32.totalorder %s17, 0
      %p105 = por %p103, %p104
      %p106 = scmp.ne.s32.totalorder %s95, %s98
      %p107 = scmp.eq.s32.totalorder %s22, 1
      %p108 = por %p106, %p107
      %p109 = scmp.ne.s32.totalorder %s98, %s99
      %p110 = scmp.eq.s32.totalorder %s22, 0
      %p111 = por %p109, %p110
      %p112 = scmp.ne.s32.totalorder %s98, %s99
      %p113 = scmp.eq.s32.totalorder %s23, 1
      %p114 = por %p112, %p113
      %p116 = scmp.ne.s32.totalorder %s99, %s115
      %p117 = scmp.eq.s32.totalorder %s23, 0
      %p118 = por %p116, %p117
      %p119 = scmp.le.s32.totalorder 1, %s17
      %p120 = scmp.lt.s32.totalorder %s17, 3
      %p121 = pnand %p119, %p120
      %p122 = pneg %p121
      // Predicated region
      $region9: #{tpu_custom_call.1} parent=5 // pred_check
        _
      $region10: #{tpu_custom_call.1} parent=5 // pred_check_branch
        %124 = sbr.rel (%p121) target = $region12
      $region11: #{tpu_custom_call.1} parent=5 // pred_region
        %s125 = ssub.s32 %s17, 1
      $region12: #{tpu_custom_call.1} parent=5 // pred_fallthru
        _
      %p126 = scmp.lt.s32.totalorder %s17, 2
      // Predicated region
      $region13: #{tpu_custom_call.1} parent=5 // pred_check
        %p127 = pneg %p126
      $region14: #{tpu_custom_call.1} parent=5 // pred_check_branch
        %129 = sbr.rel (%p127) target = $region16
      $region15: #{tpu_custom_call.1} parent=5 // pred_region
        // Predicated region
        $region17: #{tpu_custom_call.1} parent=15 // pred_check
          %p130 = pneg %p51
        $region18: #{tpu_custom_call.1} parent=15 // pred_check_branch
          %132 = sbr.rel (%p130) target = $region20
        $region19: #{tpu_custom_call.1} parent=15 // pred_region
          %s133 = sand.u32 %s41, 1
          %s134 = scalar_lea.sflag [#allocation3], %s133
          %s135 = sand.u32 %s41, 1
          %s136 = smul.addr %s135, 16
          %s137 = scalar_lea.vmem [#allocation2], %s136
          %s138 = smul.u32 2, %s25
          %s140 = ssub.s32 256, 256
          %141 = vsyncadd %s134, %s140
          %s142 = smul.addr %s24, 2
          %s143 = sadd.s32 %s138, %s142
          %s144 = smul.addr %s143, 128
          %s145 = scalar_lea.hbm %s0, %s144
          %s146 = sshll.u32 %s137, 4
          %s147 = int_to_ptr.vmem [resolvable:$true] %s146
          %152 = dma.hbm_to_vmem [thread:$0]  %s145, 256, %s147, %s134, 128, 128, 8
        $region20: #{tpu_custom_call.1} parent=15 // pred_fallthru
          _
        // Predicated region
        $region21: #{tpu_custom_call.1} parent=15 // pred_check
          %p153 = pneg %p77
        $region22: #{tpu_custom_call.1} parent=15 // pred_check_branch
          %155 = sbr.rel (%p153) target = $region24
        $region23: #{tpu_custom_call.1} parent=15 // pred_region
          %s156 = sand.u32 %s67, 1
          %s157 = scalar_lea.sflag [#allocation6], %s156
          %s158 = sand.u32 %s67, 1
          %s159 = scalar_lea.vmem [#allocation5], %s158
          %s161 = ssub.s32 16, 16
          %162 = vsyncadd %s157, %s161
          %s163 = smul.addr %s24, 16
          %s164 = scalar_lea.hbm %s1, %s163
          %s166 = sshll.u32 %s159, 4
          %s167 = int_to_ptr.vmem [resolvable:$true] %s166
          %169 = dma.hbm_to_vmem [thread:$0]  %s164, 16, %s167, %s157
        $region24: #{tpu_custom_call.1} parent=15 // pred_fallthru
          _
      $region16: #{tpu_custom_call.1} parent=5 // pred_fallthru
        _
      %p170 = scmp.le.s32.totalorder 1, %s17
      %p171 = scmp.lt.s32.totalorder %s17, 3
      %p172 = pnand %p170, %p171
      %p173 = pneg %p172
      // Predicated region
      $region25: #{tpu_custom_call.1} parent=5 // pred_check
        _
      $region26: #{tpu_custom_call.1} parent=5 // pred_check_branch
        %175 = sbr.rel (%p172) target = $region28
      $region27: #{tpu_custom_call.1} parent=5 // pred_region
        %s176 = ssub.s32 %s17, 1
        %s177 = sand.u32 %s44, 1
        %s178 = scalar_lea.sflag [#allocation3], %s177
        %s179 = sand.u32 %s44, 1
        %s180 = smul.addr %s179, 16
        %s181 = scalar_lea.vmem [#allocation2], %s180
        // Predicated region
        $region29: #{tpu_custom_call.1} parent=27 // pred_check
          %p182 = pneg %p57
        $region30: #{tpu_custom_call.1} parent=27 // pred_check_branch
          %184 = sbr.rel (%p182) target = $region32
        $region31: #{tpu_custom_call.1} parent=27 // pred_region
          %185 = dma.done %s178, 256
        $region32: #{tpu_custom_call.1} parent=27 // pred_fallthru
          _
        %s186 = sand.u32 %s70, 1
        %s187 = scalar_lea.sflag [#allocation6], %s186
        %s188 = sand.u32 %s70, 1
        %s189 = scalar_lea.vmem [#allocation5], %s188
        // Predicated region
        $region33: #{tpu_custom_call.1} parent=27 // pred_check
          %p190 = pneg %p83
        $region34: #{tpu_custom_call.1} parent=27 // pred_check_branch
          %192 = sbr.rel (%p190) target = $region36
        $region35: #{tpu_custom_call.1} parent=27 // pred_region
          %193 = dma.done %s187, 16
        $region36: #{tpu_custom_call.1} parent=27 // pred_fallthru
          _
        %s194 = sand.u32 %s44, 1
        %s195 = scalar_lea.sflag [#allocation3], %s194
        %s196 = sand.u32 %s44, 1
        %s197 = smul.addr %s196, 16
        %s198 = scalar_lea.vmem [#allocation2], %s197
        %p199 = pneg %p57
        %p200 = pneg %p54
        %s201 = sand.u32 %s70, 1
        %s202 = scalar_lea.sflag [#allocation6], %s201
        %s203 = sand.u32 %s70, 1
        %s204 = scalar_lea.vmem [#allocation5], %s203
        %p205 = pneg %p83
        %p206 = pneg %p80
        %p207 = pneg %p111
        %p208 = pneg %p108
        %s209 = sand.u32 %s98, 1
        %s210 = scalar_lea.sflag [#allocation4], %s209
        %s211 = sand.u32 %s98, 1
        %s212 = smul.addr %s211, 16
        %s213 = scalar_lea.vmem [#allocation7], %s212
        %s214 = smul.u32 2, %s27
        %s215 = smul.u32 2, %s27
        %v216 = vld [vmem:[%s181] sm:$0xff]
        %v217 = vld [vmem:[%s181 + $0x8] sm:$0xff]
        %v218 = vmul.f32 %v216, %v216
        %v219 = vmul.f32 %v217, %v217
        %220 = vadd.xlane.f32.xlu0 %v218
        %v221 = vpop.xlane.xlu0 %220
        %222 = vadd.xlane.f32.xlu0 %v219
        %v223 = vpop.xlane.xlu0 %222
        %v224 = vrcp.pop 128.0
        %v225 = vmul.f32 %v221, %v224
        %v226 = vmul.f32 %v223, %v224
        %v227 = vadd.f32 %v225, 1e-06
        %v228 = vadd.f32 %v226, 1e-06
        %v229 = vrsqrt.pop %v227
        %v230 = vrsqrt.pop %v228
        %v231 = vld [vmem:[%s189] sm:$0x1]
        %v233 = vlaneseq
        %v234 = vshrl.u32 %v233, 7
        %v235 = vsub.s32 0, %v234
        %v236 = vrot.slane %v231, %v235
        %v238 = vmul.f32 %v236, %v229
        %v239 = vmul.f32 %v236, %v230
        %v240 = vmul.f32 %v216, %v238
        %v241 = vmul.f32 %v217, %v239
        %242 = vst [vmem:[%s213] sm:$0xff] %v240
        %243 = vst [vmem:[%s213 + $0x8] sm:$0xff] %v241
        %s244 = sand.u32 %s98, 1
        %s245 = scalar_lea.sflag [#allocation4], %s244
        %s246 = sand.u32 %s98, 1
        %s247 = smul.addr %s246, 16
        %s248 = scalar_lea.vmem [#allocation7], %s247
        // Predicated region
        $region37: #{tpu_custom_call.1} parent=27 // pred_check
          %p249 = pneg %p108
        $region38: #{tpu_custom_call.1} parent=27 // pred_check_branch
          %251 = sbr.rel (%p249) target = $region40
        $region39: #{tpu_custom_call.1} parent=27 // pred_region
          %s252 = smul.u32 2, %s27
          %s254 = ssub.s32 256, 256
          %255 = vsyncadd %s245, %s254
          %s256 = smul.addr %s26, 2
          %s257 = sadd.s32 %s252, %s256
          %s258 = smul.addr %s257, 128
          %s259 = scalar_lea.hbm %s2, %s258
          %s260 = sshll.u32 %s248, 4
          %s261 = int_to_ptr.vmem [resolvable:$true] %s260
          %266 = dma.vmem_to_hbm [thread:$0]  %s261, 256, %s259, %s245, 128, 128, 8
        $region40: #{tpu_custom_call.1} parent=27 // pred_fallthru
          _
      $region28: #{tpu_custom_call.1} parent=5 // pred_fallthru
        _
      %p267 = scmp.le.s32.totalorder 2, %s17
      // Predicated region
      $region41: #{tpu_custom_call.1} parent=5 // pred_check
        %p268 = pneg %p267
      $region42: #{tpu_custom_call.1} parent=5 // pred_check_branch
        %270 = sbr.rel (%p268) target = $region44
      $region43: #{tpu_custom_call.1} parent=5 // pred_region
        %s271 = ssub.s32 %s17, 2
        // Predicated region
        $region45: #{tpu_custom_call.1} parent=43 // pred_check
          %p272 = pneg %p114
        $region46: #{tpu_custom_call.1} parent=43 // pred_check_branch
          %274 = sbr.rel (%p272) target = $region48
        $region47: #{tpu_custom_call.1} parent=43 // pred_region
          %s275 = sand.u32 %s99, 1
          %s276 = scalar_lea.sflag [#allocation4], %s275
          %s277 = sand.u32 %s99, 1
          %s278 = smul.addr %s277, 16
          %s279 = scalar_lea.vmem [#allocation7], %s278
          %280 = dma.done %s276, 256
        $region48: #{tpu_custom_call.1} parent=43 // pred_fallthru
          _
      $region44: #{tpu_custom_call.1} parent=5 // pred_fallthru
        _
    $region6: #{tpu_custom_call.1} parent=1 // loop_footer
      %s21 = sadd.s32 1, %s17
    $region7: #{tpu_custom_call.1} parent=1 // loop_footer_branch
      %16 = sbr.rel target = $region3
    $region8: #{tpu_custom_call.1} parent=1 // loop_exit
      _
    %281 = vsyncpa [#allocation3], 1
    %s282 = scalar_lea.sflag [#allocation3], 1
    %283 = vsyncpa %s282, 1
    %284 = vsyncpa [#allocation6], 1
    %s285 = scalar_lea.sflag [#allocation6], 1
    %286 = vsyncpa %s285, 1
    %287 = vsyncpa [#allocation4], 1
    %s288 = scalar_lea.sflag [#allocation4], 1
    %289 = vsyncpa %s288, 1

</llo_original>
